<compile_context>
chip_gen: v5e
topology: v5e:2x2
jax: 0.10.0
libtpu: 0.0.40
codegen_flags: <defaults>
</compile_context>

<pallas_src>
import jax
import jax.numpy as jnp
from jax.experimental import pallas as pl
from jax.experimental.pallas import tpu as pltpu


def _leaky_relu(x, slope=0.01):
    return jnp.where(x >= 0, x, slope * x)


def _pad128(n):
    return ((n + 127) // 128) * 128


def _pack_layout(d, H_a, D_a):
    """Lane-aligned layout of the packed small-parameter row (all f32)."""
    o_b1 = 0                                    # (1, H_a)
    o_bvu = o_b1 + _pad128(H_a)                 # (1, 2*D_a)   bv | bu
    o_ww = o_bvu + _pad128(2 * D_a)             # (1, D_a)     attention_weights W as a row
    o_bw = o_ww + _pad128(D_a)                  # (1, 1)
    o_be = o_bw + 128                           # (1, pad128(d)) zero-padded past d
    total = o_be + _pad128(d)
    return (o_b1, o_bvu, o_ww, o_bw, o_be), total


def _slab_layout(d, H_a, D_a):
    """Lane-aligned layout of the fused weight slab."""
    o_w1 = 0                                    # (d,   H_a)
    o_wvu = o_w1 + _pad128(H_a)                 # (H_a, 2*D_a)   wv | wu
    o_we = o_wvu + _pad128(2 * D_a)             # (H_a, pad128(d)) zero-padded cols
    total = o_we + _pad128(d)
    rows = ((max(d, H_a) + 7) // 8) * 8
    return (o_w1, o_wvu, o_we), total, rows


def _make_kernel(N, d, H_a, D_a):
    (o_b1, o_bvu, o_ww, o_bw, o_be), _ = _pack_layout(d, H_a, D_a)
    (o_w1, o_wvu, o_we), _, _ = _slab_layout(d, H_a, D_a)
    PD = _pad128(d)
    PN = _pad128(N)

    def kernel(x_ref, w_ref, pack_ref, out_ref):
        mxu_dt = w_ref.dtype                             # f32, or bf16 for v6e/v7x MXU

        x = x_ref[...]                                   # (N, d) f32
        # Static, 128-lane-aligned views into the packed small-parameter row.
        b1 = pack_ref[:, o_b1:o_b1 + H_a]                # (1, H_a)
        bvu = pack_ref[:, o_bvu:o_bvu + 2 * D_a]         # (1, 2*D_a)
        ww_row = pack_ref[:, o_ww:o_ww + D_a]            # (1, D_a)
        bw = pack_ref[:, o_bw:o_bw + 1]                  # (1, 1)
        be = pack_ref[:, o_be:o_be + PD]                 # (1, PD)  zero-padded past d

        # feature_extractor_part: Linear(d, H_a) -> (Dropout=id) -> LeakyReLU
        w1 = w_ref[0:d, o_w1:o_w1 + H_a]                 # (d, H_a)
        h = _leaky_relu(
            jnp.dot(x.astype(mxu_dt), w1, preferred_element_type=jnp.float32) + b1
        )                                                # (N, H_a) f32

        # fused attention_V | attention_U projection (single MXU pass)
        wvu = w_ref[0:H_a, o_wvu:o_wvu + 2 * D_a]        # (H_a, 2*D_a)
        f = jnp.dot(h.astype(mxu_dt), wvu, preferred_element_type=jnp.float32) + bvu
        a_v = jnp.tanh(f[:, :D_a])                       # (N, D_a)
        a_u = _leaky_relu(f[:, D_a:])                    # (N, D_a)

        # attention_weights: 1-column "matmul" done as VPU mul + lane reduce
        gate = a_v * a_u                                 # (N, D_a)
        scores = jnp.sum(gate * ww_row, axis=1, keepdims=True) + bw     # (N, 1)
        scores = _leaky_relu(scores)

        # softmax over the N instances (exact reciprocal: keeps 1e-5 accuracy)
        m_max = jnp.max(scores, axis=0, keepdims=True)   # (1, 1)
        e = jnp.exp(scores - m_max)                      # (N, 1)
        denom = jnp.sum(e, axis=0, keepdims=True)        # (1, 1)
        a_norm = e * pl.reciprocal(denom, approx=False)  # (N, 1)

        # M = A @ h  (weighted sum over instances: VPU mul + sublane reduce)
        m = jnp.sum(a_norm * h, axis=0, keepdims=True)   # (1, H_a) f32

        # embedding: Linear(H_a, d) -> LeakyReLU  (we band zero-padded to PD lanes)
        we = w_ref[0:H_a, o_we:o_we + PD]                # (H_a, PD)
        m_emb = _leaky_relu(
            jnp.dot(m.astype(mxu_dt), we, preferred_element_type=jnp.float32) + be
        )                                                # (1, PD); zeros past d

        # transpose(a_norm) -> lane-dense (1, PN) row via one-hot sublane reduce
        row_id = jax.lax.broadcasted_iota(jnp.int32, (N, PN), 0)
        lane_id = jax.lax.broadcasted_iota(jnp.int32, (N, PN), 1)
        onehot = (row_id == lane_id).astype(jnp.float32)
        a_row = jnp.sum(a_norm * onehot, axis=0, keepdims=True)          # (1, PN)

        # single lane-dense output slab: M | A^T (both stores 128-lane aligned)
        out_ref[:, 0:PD] = m_emb.astype(out_ref.dtype)
        out_ref[:, PD:PD + PN] = a_row.astype(out_ref.dtype)

    return kernel


def _pad_row(v, width):
    return jnp.pad(v, ((0, 0), (0, width - v.shape[1])))


def prepare_params(params, *, mxu_dtype=jnp.float32):
    """One-time packing of AttentionBlock parameters for the Pallas kernel.

    Hoisted out of the forward path: the per-call graph is just the kernel
    (plus one squeeze and two output slices).
    """
    w1, b1, wv, bv, wu, bu, ww, bw, we, be = params
    d, H_a = w1.shape
    D_a = wv.shape[1]

    (o_w1, o_wvu, o_we), slab_w, slab_r = _slab_layout(d, H_a, D_a)
    slab = jnp.zeros((slab_r, slab_w), jnp.float32)
    slab = slab.at[0:d, o_w1:o_w1 + H_a].set(w1)
    slab = slab.at[0:H_a, o_wvu:o_wvu + 2 * D_a].set(jnp.concatenate([wv, wu], axis=1))
    slab = slab.at[0:H_a, o_we:o_we + d].set(we)
    slab = slab.astype(mxu_dtype)

    _offsets, pack_w = _pack_layout(d, H_a, D_a)
    pack = jnp.concatenate(
        [
            _pad_row(b1, _pad128(H_a)),
            _pad_row(jnp.concatenate([bv, bu], axis=1), _pad128(2 * D_a)),
            _pad_row(jnp.transpose(ww), _pad128(D_a)),   # ww as a (1, D_a) row
            _pad_row(bw, 128),
            _pad_row(be, _pad128(d)),
        ],
        axis=1,
    )
    assert pack.shape == (1, pack_w)
    return dict(slab=slab, pack=pack, d=d, H_a=H_a, D_a=D_a)


def attention_block(x, prepared):
    """x: (1, N, d) like the PyTorch module (squeeze(0) happens here)."""
    x2d = jnp.squeeze(x, axis=0)                         # (N, d)
    N, d = x2d.shape
    assert d == prepared["d"]
    H_a, D_a = prepared["H_a"], prepared["D_a"]
    PD, PN = _pad128(d), _pad128(N)

    kernel = _make_kernel(N, d, H_a, D_a)
    vmem = lambda: pl.BlockSpec(memory_space=pltpu.MemorySpace.VMEM)

    out = pl.pallas_call(
        kernel,
        in_specs=[vmem(), vmem(), vmem()],
        out_specs=vmem(),
        out_shape=jax.ShapeDtypeStruct((1, PD + PN), jnp.float32),
    )(x2d, prepared["slab"], prepared["pack"])

    m_out = out[:, :d]                                   # (1, d)
    a_out = out[:, PD:PD + N]                            # (1, N)
    return m_out, a_out


def init_params(key, d, H_a, D_a):
    """Deterministic synthetic parameters, stored as (in, out) matrices."""
    ks = jax.random.split(key, 10)
    scale = 0.1
    w1 = scale * jax.random.normal(ks[0], (d, H_a), jnp.float32)
    b1 = scale * jax.random.normal(ks[1], (1, H_a), jnp.float32)
    wv = scale * jax.random.normal(ks[2], (H_a, D_a), jnp.float32)
    bv = scale * jax.random.normal(ks[3], (1, D_a), jnp.float32)
    wu = scale * jax.random.normal(ks[4], (H_a, D_a), jnp.float32)
    bu = scale * jax.random.normal(ks[5], (1, D_a), jnp.float32)
    ww = scale * jax.random.normal(ks[6], (D_a, 1), jnp.float32)
    bw = scale * jax.random.normal(ks[7], (1, 1), jnp.float32)
    we = scale * jax.random.normal(ks[8], (H_a, d), jnp.float32)
    be = scale * jax.random.normal(ks[9], (1, d), jnp.float32)
    return (w1, b1, wv, bv, wu, bu, ww, bw, we, be)


def reference(x, params):
    """Pure-JAX reference mirroring the PyTorch forward (eval mode)."""
    x2d = jnp.squeeze(x, axis=0)
    w1, b1, wv, bv, wu, bu, ww, bw, we, be = params
    lrelu = lambda v: jnp.where(v >= 0, v, 0.01 * v)
    h = lrelu(x2d @ w1 + b1)
    a_v = jnp.tanh(h @ wv + bv)
    a_u = lrelu(h @ wu + bu)
    a = lrelu((a_v * a_u) @ ww + bw)          # (N, 1)
    a = a.T                                    # (1, N)
    a = jax.nn.softmax(a, axis=1)
    m = a @ h                                  # (1, H_a)
    m = lrelu(m @ we + be)                     # (1, d)
    return m, a


if __name__ == "__main__":
    # Small shapes implied by the forward: bag of N instances, feature dim d,
    # hidden H_a, attention dim D_a.
    N, d, H_a, D_a = 8, 32, 64, 32

    key = jax.random.PRNGKey(0)
    kx, kp = jax.random.split(key)
    x = jax.random.normal(kx, (1, N, d), jnp.float32)   # matches PyTorch squeeze(0)
    params = init_params(kp, d, H_a, D_a)
    m_ref, a_ref = reference(x, params)

    # Exact f32-MXU path (portable; tight tolerance).
    prepared = prepare_params(params)                    # packing done once, off the forward path
    m_out, a_out = attention_block(x, prepared)
    jax.block_until_ready((m_out, a_out))
    assert m_out.shape == (1, d) and a_out.shape == (1, N)
    assert jnp.allclose(m_out, m_ref, atol=1e-5, rtol=1e-5)
    assert jnp.allclose(a_out, a_ref, atol=1e-5, rtol=1e-5)

    # bf16 MXU-operand path (v6e/v7x-friendly); looser tolerance per review.
    prepared_bf16 = prepare_params(params, mxu_dtype=jnp.bfloat16)
    m_bf, a_bf = attention_block(x, prepared_bf16)
    jax.block_until_ready((m_bf, a_bf))
    assert jnp.allclose(m_bf, m_ref, atol=3e-2, rtol=3e-2)
    assert jnp.allclose(a_bf, a_ref, atol=3e-2, rtol=3e-2)

    print("KERNEL_OK")
</pallas_src>

<mosaic_0001>
module attributes {stable_mosaic.version = 11 : i64} {
  func.func @kernel(%arg0: memref<8x32xf32, #tpu.memory_space<vmem>>, %arg1: memref<64x384xf32, #tpu.memory_space<vmem>>, %arg2: memref<1x640xf32, #tpu.memory_space<vmem>>, %arg3: memref<1x256xf32, #tpu.memory_space<vmem>>) attributes {dimension_semantics = [], scalar_prefetch = 0 : i64, scratch_operands = 0 : i64, tpu.core_type = #tpu.core_type<tc>} {
    %c0 = arith.constant 0 : index
    %c0_0 = arith.constant 0 : index
    %0 = vector.load %arg0[%c0, %c0_0] : memref<8x32xf32, #tpu.memory_space<vmem>>, vector<8x32xf32>
    %c0_1 = arith.constant 0 : index
    %c0_2 = arith.constant 0 : index
    %1 = vector.load %arg2[%c0_1, %c0_2] : memref<1x640xf32, #tpu.memory_space<vmem>>, vector<1x64xf32>
    %c0_3 = arith.constant 0 : index
    %c128 = arith.constant 128 : index
    %2 = vector.load %arg2[%c0_3, %c128] : memref<1x640xf32, #tpu.memory_space<vmem>>, vector<1x64xf32>
    %c0_4 = arith.constant 0 : index
    %c256 = arith.constant 256 : index
    %3 = vector.load %arg2[%c0_4, %c256] : memref<1x640xf32, #tpu.memory_space<vmem>>, vector<1x32xf32>
    %c0_5 = arith.constant 0 : index
    %c384 = arith.constant 384 : index
    %4 = vector.load %arg2[%c0_5, %c384] : memref<1x640xf32, #tpu.memory_space<vmem>>, vector<1x1xf32>
    %c0_6 = arith.constant 0 : index
    %c512 = arith.constant 512 : index
    %5 = vector.load %arg2[%c0_6, %c512] : memref<1x640xf32, #tpu.memory_space<vmem>>, vector<1x128xf32>
    %c0_7 = arith.constant 0 : index
    %c0_8 = arith.constant 0 : index
    %6 = vector.load %arg1[%c0_7, %c0_8] : memref<64x384xf32, #tpu.memory_space<vmem>>, vector<32x64xf32>
    %cst = arith.constant dense<0.000000e+00> : vector<8x64xf32>
    %7 = tpu.matmul %0, %6, %cst {dimension_numbers = #tpu.dot_dimension_numbers<[1], [0], [0], [1], [0, 0, 1, 1], [], []>} : vector<8x32xf32>, vector<32x64xf32>, vector<8x64xf32> -> vector<8x64xf32>
    %8 = vector.broadcast %1 : vector<1x64xf32> to vector<8x64xf32>
    %9 = arith.addf %7, %8 : vector<8x64xf32>
    %cst_9 = arith.constant 0.000000e+00 : f32
    %10 = vector.broadcast %cst_9 : f32 to vector<8x64xf32>
    %11 = arith.cmpf oge, %9, %10 : vector<8x64xf32>
    %cst_10 = arith.constant 0.00999999977 : f32
    %12 = vector.broadcast %cst_10 : f32 to vector<8x64xf32>
    %13 = arith.mulf %12, %9 : vector<8x64xf32>
    %14 = arith.select %11, %9, %13 : vector<8x64xi1>, vector<8x64xf32>
    %c0_11 = arith.constant 0 : index
    %c128_12 = arith.constant 128 : index
    %15 = vector.load %arg1[%c0_11, %c128_12] : memref<64x384xf32, #tpu.memory_space<vmem>>, vector<64x64xf32>
    %cst_13 = arith.constant dense<0.000000e+00> : vector<8x64xf32>
    %16 = tpu.matmul %14, %15, %cst_13 {dimension_numbers = #tpu.dot_dimension_numbers<[1], [0], [0], [1], [0, 0, 1, 1], [], []>} : vector<8x64xf32>, vector<64x64xf32>, vector<8x64xf32> -> vector<8x64xf32>
    %17 = vector.broadcast %2 : vector<1x64xf32> to vector<8x64xf32>
    %18 = arith.addf %16, %17 : vector<8x64xf32>
    %19 = vector.extract_strided_slice %18 {offsets = [0, 0], sizes = [8, 32], strides = [1, 1]} : vector<8x64xf32> to vector<8x32xf32>
    %20 = math.tanh %19 : vector<8x32xf32>
    %21 = vector.extract_strided_slice %18 {offsets = [0, 32], sizes = [8, 32], strides = [1, 1]} : vector<8x64xf32> to vector<8x32xf32>
    %cst_14 = arith.constant 0.000000e+00 : f32
    %22 = vector.broadcast %cst_14 : f32 to vector<8x32xf32>
    %23 = arith.cmpf oge, %21, %22 : vector<8x32xf32>
    %cst_15 = arith.constant 0.00999999977 : f32
    %24 = vector.broadcast %cst_15 : f32 to vector<8x32xf32>
    %25 = arith.mulf %24, %21 : vector<8x32xf32>
    %26 = arith.select %23, %21, %25 : vector<8x32xi1>, vector<8x32xf32>
    %27 = arith.mulf %20, %26 : vector<8x32xf32>
    %28 = vector.broadcast %3 : vector<1x32xf32> to vector<8x32xf32>
    %29 = arith.mulf %27, %28 : vector<8x32xf32>
    %cst_16 = arith.constant dense<0.000000e+00> : vector<8xf32>
    %30 = vector.multi_reduction <add>, %29, %cst_16 [1] : vector<8x32xf32> to vector<8xf32>
    %31 = vector.shape_cast %30 : vector<8xf32> to vector<8x1xf32>
    %32 = vector.broadcast %4 : vector<1x1xf32> to vector<8x1xf32>
    %33 = arith.addf %31, %32 : vector<8x1xf32>
    %cst_17 = arith.constant 0.000000e+00 : f32
    %34 = vector.broadcast %cst_17 : f32 to vector<8x1xf32>
    %35 = arith.cmpf oge, %33, %34 : vector<8x1xf32>
    %cst_18 = arith.constant 0.00999999977 : f32
    %36 = vector.broadcast %cst_18 : f32 to vector<8x1xf32>
    %37 = arith.mulf %36, %33 : vector<8x1xf32>
    %38 = arith.select %35, %33, %37 : vector<8x1xi1>, vector<8x1xf32>
    %cst_19 = arith.constant dense<0xFF800000> : vector<1xf32>
    %39 = vector.multi_reduction <maximumf>, %38, %cst_19 [0] : vector<8x1xf32> to vector<1xf32>
    %40 = vector.shape_cast %39 : vector<1xf32> to vector<1x1xf32>
    %41 = vector.broadcast %40 : vector<1x1xf32> to vector<8x1xf32>
    %42 = arith.subf %38, %41 : vector<8x1xf32>
    %43 = math.exp %42 : vector<8x1xf32>
    %cst_20 = arith.constant dense<0.000000e+00> : vector<1xf32>
    %44 = vector.multi_reduction <add>, %43, %cst_20 [0] : vector<8x1xf32> to vector<1xf32>
    %45 = vector.shape_cast %44 : vector<1xf32> to vector<1x1xf32>
    %46 = tpu.reciprocal %45 : vector<1x1xf32> -> vector<1x1xf32>
    %47 = vector.broadcast %46 : vector<1x1xf32> to vector<8x1xf32>
    %48 = arith.mulf %43, %47 : vector<8x1xf32>
    %49 = vector.broadcast %48 : vector<8x1xf32> to vector<8x64xf32>
    %50 = arith.mulf %49, %14 : vector<8x64xf32>
    %cst_21 = arith.constant dense<0.000000e+00> : vector<64xf32>
    %51 = vector.multi_reduction <add>, %50, %cst_21 [0] : vector<8x64xf32> to vector<64xf32>
    %52 = vector.shape_cast %51 : vector<64xf32> to vector<1x64xf32>
    %c0_22 = arith.constant 0 : index
    %c256_23 = arith.constant 256 : index
    %53 = vector.load %arg1[%c0_22, %c256_23] : memref<64x384xf32, #tpu.memory_space<vmem>>, vector<64x128xf32>
    %cst_24 = arith.constant dense<0.000000e+00> : vector<1x128xf32>
    %54 = tpu.matmul %52, %53, %cst_24 {dimension_numbers = #tpu.dot_dimension_numbers<[1], [0], [0], [1], [0, 0, 1, 1], [], []>} : vector<1x64xf32>, vector<64x128xf32>, vector<1x128xf32> -> vector<1x128xf32>
    %55 = arith.addf %54, %5 : vector<1x128xf32>
    %cst_25 = arith.constant 0.000000e+00 : f32
    %56 = vector.broadcast %cst_25 : f32 to vector<1x128xf32>
    %57 = arith.cmpf oge, %55, %56 : vector<1x128xf32>
    %cst_26 = arith.constant 0.00999999977 : f32
    %58 = vector.broadcast %cst_26 : f32 to vector<1x128xf32>
    %59 = arith.mulf %58, %55 : vector<1x128xf32>
    %60 = arith.select %57, %55, %59 : vector<1x128xi1>, vector<1x128xf32>
    %61 = tpu.iota {dimensions = array<i32: 0>} : vector<8x128xi32>
    %62 = tpu.iota {dimensions = array<i32: 1>} : vector<8x128xi32>
    %63 = arith.cmpi eq, %61, %62 : vector<8x128xi32>
    %64 = arith.extui %63 : vector<8x128xi1> to vector<8x128xi32>
    %65 = arith.sitofp %64 : vector<8x128xi32> to vector<8x128xf32>
    %66 = vector.broadcast %48 : vector<8x1xf32> to vector<8x128xf32>
    %67 = arith.mulf %66, %65 : vector<8x128xf32>
    %cst_27 = arith.constant dense<0.000000e+00> : vector<128xf32>
    %68 = vector.multi_reduction <add>, %67, %cst_27 [0] : vector<8x128xf32> to vector<128xf32>
    %69 = vector.shape_cast %68 : vector<128xf32> to vector<1x128xf32>
    %c0_28 = arith.constant 0 : index
    %c0_29 = arith.constant 0 : index
    %70 = vector.load %arg3[%c0_28, %c0_29] : memref<1x256xf32, #tpu.memory_space<vmem>>, vector<1x128xf32>
    tpu.vector_store %arg3[%c0_28, %c0_29], %60 {strides = array<i32>} : memref<1x256xf32, #tpu.memory_space<vmem>>, vector<1x128xf32>,
    %c0_30 = arith.constant 0 : index
    %c128_31 = arith.constant 128 : index
    %71 = vector.load %arg3[%c0_30, %c128_31] : memref<1x256xf32, #tpu.memory_space<vmem>>, vector<1x128xf32>
    tpu.vector_store %arg3[%c0_30, %c128_31], %69 {strides = array<i32>} : memref<1x256xf32, #tpu.memory_space<vmem>>, vector<1x128xf32>,
    return
  }
}

</mosaic_0001>

<llo_original>
// kernel: tpu_custom_call.1
$region0: #{tpu_custom_call.1}
  #allocation0 [shape = 'u32[]', space=smem, size = 0x4, offset = 0x4, fixed_abs, tag = 'smem constant byte address 0x4 - core index']
  #allocation1 [shape = 'u32[72,128]{1,0:T(1,128)}', space=vmem, size = 0x9000, scoped, tag = 'internal scratch']
  %s0 = inlined_call_operand.hbm [shape: f32[8,32], index: 0, kind: input, shape index: {}]
  %s1 = inlined_call_operand.hbm [shape: f32[64,384], index: 1, kind: input, shape index: {}]
  %s2 = inlined_call_operand.hbm [shape: f32[1,640], index: 2, kind: input, shape index: {}]
  %s3 = inlined_call_operand.hbm [shape: f32[1,256], index: 3, kind: output, shape index: {}]
  %s4 = sld [smem:[#allocation0]]
  $region34: #{tpu_custom_call.1} parent=0
    _
  %s6 = ssub.s32 1, %s4
  %s7 = scalar_select 0, %s6, %s4
  $region1: #{tpu_custom_call.1} parent=0
    #allocation2 [shape = 'u8[4096]{0}', space=vmem, size = 0x1000, scoped, tag = 'input window, operand 0, single buffered']
    #allocation3 [shape = 's32[1]{0}', space=sflag, size = 0x4, scoped, tag = 'scoped memory for tpu_custom_call.1']
    #allocation4 [shape = 's32[1]{0}', space=sflag, size = 0x4, scoped, tag = 'scoped memory for tpu_custom_call.1']
    #allocation5 [shape = 'u8[98304]{0}', space=vmem, size = 0x18000, scoped, tag = 'input window, operand 1, single buffered']
    #allocation6 [shape = 's32[1]{0}', space=sflag, size = 0x4, scoped, tag = 'scoped memory for tpu_custom_call.1']
    #allocation7 [shape = 'u8[2560]{0}', space=vmem, size = 0xc00, scoped, tag = 'input window, operand 2, single buffered']
    #allocation8 [shape = 'u8[1024]{0}', space=vmem, size = 0x400, scoped, tag = 'output window, operand 0, single buffered']
    %8 = vsyncpa [#allocation3], 0
    %9 = vsyncpa [#allocation6], 0
    %10 = vsyncpa [#allocation4], 0
    // Predicated region
    $region2: #{tpu_custom_call.1} parent=1 // pred_check
      _
    $region3: #{tpu_custom_call.1} parent=1 // pred_check_branch
      %12 = sbr.rel (0) target = $region5
    $region4: #{tpu_custom_call.1} parent=1 // pred_region
      %14 = vsyncadd [#allocation3], 0
      %s16 = sshll.u32 %s0, 4
      %s17 = int_to_ptr.hbm [resolvable:$true] %s16
      %s18 = sshll.u32 [#allocation2], 4
      %s19 = int_to_ptr.vmem [resolvable:$true] %s18
      %21 = dma.hbm_to_vmem [thread:$0]  %s17, 128, %s19, [#allocation3]
    $region5: #{tpu_custom_call.1} parent=1 // pred_fallthru
      _
    // Predicated region
    $region6: #{tpu_custom_call.1} parent=1 // pred_check
      _
    $region7: #{tpu_custom_call.1} parent=1 // pred_check_branch
      %23 = sbr.rel (0) target = $region9
    $region8: #{tpu_custom_call.1} parent=1 // pred_region
      %25 = vsyncadd [#allocation6], 0
      %s26 = sshll.u32 %s1, 4
      %s27 = int_to_ptr.hbm [resolvable:$true] %s26
      %s28 = sshll.u32 [#allocation5], 4
      %s29 = int_to_ptr.vmem [resolvable:$true] %s28
      %34 = dma.hbm_to_vmem [thread:$0]  %s27, 3072, %s29, [#allocation6], 384, 384, 24
    $region9: #{tpu_custom_call.1} parent=1 // pred_fallthru
      _
    // Predicated region
    $region10: #{tpu_custom_call.1} parent=1 // pred_check
      _
    $region11: #{tpu_custom_call.1} parent=1 // pred_check_branch
      %36 = sbr.rel (0) target = $region13
    $region12: #{tpu_custom_call.1} parent=1 // pred_region
      %38 = vsyncadd [#allocation6], 0
      %s40 = sshll.u32 %s2, 4
      %s41 = int_to_ptr.hbm [resolvable:$true] %s40
      %s42 = sshll.u32 [#allocation7], 4
      %s43 = int_to_ptr.vmem [resolvable:$true] %s42
      %45 = dma.hbm_to_vmem [thread:$0]  %s41, 80, %s43, [#allocation6]
    $region13: #{tpu_custom_call.1} parent=1 // pred_fallthru
      _
    // Predicated region
    $region14: #{tpu_custom_call.1} parent=1 // pred_check
      _
    $region15: #{tpu_custom_call.1} parent=1 // pred_check_branch
      %47 = sbr.rel (0) target = $region17
    $region16: #{tpu_custom_call.1} parent=1 // pred_region
      %49 = dma.done [#allocation3], 128
    $region17: #{tpu_custom_call.1} parent=1 // pred_fallthru
      _
    // Predicated region
    $region18: #{tpu_custom_call.1} parent=1 // pred_check
      _
    $region19: #{tpu_custom_call.1} parent=1 // pred_check_branch
      %51 = sbr.rel (0) target = $region21
    $region20: #{tpu_custom_call.1} parent=1 // pred_region
      %53 = dma.done [#allocation6], 3072
    $region21: #{tpu_custom_call.1} parent=1 // pred_fallthru
      _
    // Predicated region
    $region22: #{tpu_custom_call.1} parent=1 // pred_check
      _
    $region23: #{tpu_custom_call.1} parent=1 // pred_check_branch
      %55 = sbr.rel (0) target = $region25
    $region24: #{tpu_custom_call.1} parent=1 // pred_region
      %57 = dma.done [#allocation6], 80
    $region25: #{tpu_custom_call.1} parent=1 // pred_fallthru
      _
    %v58 = vld [vmem:[#allocation2] sm:$0xff]
    %v59 = vld [vmem:[#allocation7] sm:$0x1]
    %v60 = vld [vmem:[#allocation7 + $0x1] sm:$0x1]
    %v61 = vld [vmem:[#allocation7 + $0x2] sm:$0x1]
    %v62 = vld [vmem:[#allocation7 + $0x3] sm:$0x1]
    %v63 = vld [vmem:[#allocation7 + $0x4] sm:$0x1]
    %v64 = vld [vmem:[#allocation5] sm:$0xff]
    %v65 = vld [vmem:[#allocation5 + $0x18] sm:$0xff]
    %v66 = vld [vmem:[#allocation5 + $0x30] sm:$0xff]
    %v67 = vld [vmem:[#allocation5 + $0x48] sm:$0xff]
    %v69 = vperm.slane %v59, 0
    %vm71 = vcmask 261120
    %v73 = vsel %vm71, %v58, 0
    %75 = vmatpush.msra.mxu0 0.0
    %76 = vmatpush.msra.mxu0 0.0
    %77 = vmatpush.msra.mxu0 0.0
    %78 = vmatpush.msra.mxu0 0.0
    %79 = vmatpush.msra.mxu0 0.0
    %80 = vmatpush.msra.mxu0 0.0
    %81 = vmatpush.msra.mxu0 0.0
    %82 = vmatpush.msra.mxu0 0.0
    %83 = vmatpush.msra.mxu0 0.0
    %84 = vmatpush.msra.mxu0 0.0
    %85 = vmatpush.msra.mxu0 0.0
    %86 = vmatpush.msra.mxu0 0.0
    %87 = vmatpush.msra.mxu0 %v67
    %88 = vmatpush.msra.mxu0 %v66
    %89 = vmatpush.msra.mxu0 %v65
    %90 = vmatpush.msra.mxu0 %v64
    %91 = vmatmul.f32.gmra.mxu0 %v73
    %v92 = vpop.f32.mrf.mxu0
    %v93 = vadd.f32 %v69, %v92
    %94 = vdwg.mxu0
    %vm95 = vcmp.ge.f32.partialorder %v93, 0.0
    %v96 = vmul.f32 %v93, 0.01
    %v97 = vsel %vm95, %v93, %v96
    %v98 = vld [vmem:[#allocation5 + $0x8] sm:$0xff]
    %v99 = vld [vmem:[#allocation5 + $0x20] sm:$0xff]
    %v100 = vld [vmem:[#allocation5 + $0x38] sm:$0xff]
    %v101 = vld [vmem:[#allocation5 + $0x50] sm:$0xff]
    %v102 = vld [vmem:[#allocation5 + $0x68] sm:$0xff]
    %v103 = vld [vmem:[#allocation5 + $0x80] sm:$0xff]
    %v104 = vld [vmem:[#allocation5 + $0x98] sm:$0xff]
    %v105 = vld [vmem:[#allocation5 + $0xb0] sm:$0xff]
    %v107 = vperm.slane %v60, 0
    %vm109 = vcmask 523264
    %v111 = vsel %vm109, %v97, 0
    %113 = vmatpush.msra.mxu0 0.0
    %114 = vmatpush.msra.mxu0 0.0
    %115 = vmatpush.msra.mxu0 0.0
    %116 = vmatpush.msra.mxu0 0.0
    %117 = vmatpush.msra.mxu0 0.0
    %118 = vmatpush.msra.mxu0 0.0
    %119 = vmatpush.msra.mxu0 0.0
    %120 = vmatpush.msra.mxu0 0.0
    %121 = vmatpush.msra.mxu0 %v105
    %122 = vmatpush.msra.mxu0 %v104
    %123 = vmatpush.msra.mxu0 %v103
    %124 = vmatpush.msra.mxu0 %v102
    %125 = vmatpush.msra.mxu0 %v101
    %126 = vmatpush.msra.mxu0 %v100
    %127 = vmatpush.msra.mxu0 %v99
    %128 = vmatpush.msra.mxu0 %v98
    %129 = vmatmul.f32.gmra.mxu0 %v111
    %v130 = vpop.f32.mrf.mxu0
    %v131 = vadd.f32 %v107, %v130
    %132 = vdwg.mxu0
    %v133 = vtanh.pop %v131
    %vm134 = vcmp.ge.f32.partialorder %v131, 0.0
    %v135 = vmul.f32 %v131, 0.01
    %v136 = vsel %vm134, %v131, %v135
    %138 = vrot.lane.b32.xlu0 %v136, 96
    %v139 = vpop.permute.xlu0 %138
    %v141 = vmul.f32 %v133, %v139
    %v143 = vperm.slane %v61, 0
    %v145 = vmul.f32 %v141, %v143
    %v146 = vsel %vm71, %v145, 0.0
    %147 = vadd.xlane.f32.xlu0 %v146
    %v148 = vpop.xlane.xlu0 %147
    %v150 = vperm.slane %v62, 0
    %v152 = vadd.f32 %v148, %v150
    %vm153 = vcmp.ge.f32.partialorder %v152, 0.0
    %v154 = vmul.f32 %v152, 0.01
    %v155 = vsel %vm153, %v152, %v154
    %vm156 = vcmask 7168
    %v157 = vsel %vm156, %v155, -inf
    %v158 = vrot.slane %v157, 4
    %v159 = vmax.f32 %v157, %v158
    %v160 = vrot.slane %v159, 2
    %v161 = vmax.f32 %v159, %v160
    %v162 = vrot.slane %v161, 1
    %v163 = vmax.f32 %v161, %v162
    %v164 = vsub.f32 %v155, %v163
    %v165 = vmul.f32 %v164, 1.442695
    %v166 = vpow.pop %v165
    %v167 = vsel %vm156, %v166, 0.0
    %v168 = vrot.slane %v167, 4
    %v169 = vadd.f32 %v167, %v168
    %v170 = vrot.slane %v169, 2
    %v171 = vadd.f32 %v169, %v170
    %v172 = vrot.slane %v171, 1
    %v173 = vadd.f32 %v171, %v172
    %v174 = vrcp.pop %v173
    %v175 = vmul.f32 %v173, %v174
    %v176 = vsub.f32 1.0, %v175
    %v177 = vmul.f32 %v174, %v176
    %v178 = vadd.f32 %v174, %v177
    %vm179 = vweird.f32 %v173
    %vm180 = vweird.f32 %v174
    %vm181 = vmor %vm179, %vm180
    %v182 = vsel %vm181, %v174, %v178
    %v183 = vand.u32 2147483647, %v173
    %vm184 = vcmp.eq.f32.partialorder %v183, 8.507059e+37
    %v185 = vand.u32 %v173, 2147483648
    %v186 = vor.u32 1.1754944e-38, %v185
    %v187 = vsel %vm184, %v186, %v182
    %v188 = vmul.f32 %v166, %v187
    %190 = vset.pattern.permute.xlu0 0
    %191 = vperm.xlu0 %190, %v188
    %v192 = vpop.permute.xlu0 %191
    %v194 = vmul.f32 %v192, %v97
    %v195 = vsel %vm109, %v194, 0.0
    %v196 = vrot.slane %v195, 4
    %v197 = vadd.f32 %v195, %v196
    %v198 = vrot.slane %v197, 2
    %v199 = vadd.f32 %v197, %v198
    %v200 = vrot.slane %v199, 1
    %v201 = vadd.f32 %v199, %v200
    %v202 = vld [vmem:[#allocation5 + $0x10] sm:$0xff]
    %v203 = vld [vmem:[#allocation5 + $0x28] sm:$0xff]
    %v204 = vld [vmem:[#allocation5 + $0x40] sm:$0xff]
    %v205 = vld [vmem:[#allocation5 + $0x58] sm:$0xff]
    %v206 = vld [vmem:[#allocation5 + $0x70] sm:$0xff]
    %v207 = vld [vmem:[#allocation5 + $0x88] sm:$0xff]
    %v208 = vld [vmem:[#allocation5 + $0xa0] sm:$0xff]
    %v209 = vld [vmem:[#allocation5 + $0xb8] sm:$0xff]
    %v211 = vsel %vm109, %v201, 0
    %213 = vmatpush.msra.mxu0 0.0
    %214 = vmatpush.msra.mxu0 0.0
    %215 = vmatpush.msra.mxu0 0.0
    %216 = vmatpush.msra.mxu0 0.0
    %217 = vmatpush.msra.mxu0 0.0
    %218 = vmatpush.msra.mxu0 0.0
    %219 = vmatpush.msra.mxu0 0.0
    %220 = vmatpush.msra.mxu0 0.0
    %221 = vmatpush.msra.mxu0 %v209
    %222 = vmatpush.msra.mxu0 %v208
    %223 = vmatpush.msra.mxu0 %v207
    %224 = vmatpush.msra.mxu0 %v206
    %225 = vmatpush.msra.mxu0 %v205
    %226 = vmatpush.msra.mxu0 %v204
    %227 = vmatpush.msra.mxu0 %v203
    %228 = vmatpush.msra.mxu0 %v202
    %229 = vmatmul.f32.gmra.mxu0 %v211
    %v230 = vpop.f32.mrf.mxu0
    %v231 = vadd.f32 %v63, %v230
    %232 = vdwg.mxu0
    %vm233 = vcmp.ge.f32.partialorder %v231, 0.0
    %v234 = vmul.f32 %v231, 0.01
    %v235 = vsel %vm233, %v231, %v234
    %v236 = vlaneseq
    %v237 = vshrl.u32 %v236, 7
    %v238 = vlaneseq
    %v239 = vand.u32 %v238, 127
    %vm240 = vcmp.eq.s32.totalorder %v237, %v239
    %v241 = vsel %vm240, 1, 0
    %v242 = vcvt.s32.f32 %v241
    %v243 = vmul.f32 %v192, %v242
    %v244 = vrot.slane %v243, 4
    %v245 = vadd.f32 %v243, %v244
    %v246 = vrot.slane %v245, 2
    %v247 = vadd.f32 %v245, %v246
    %v248 = vrot.slane %v247, 1
    %v249 = vadd.f32 %v247, %v248
    %v250 = vlaneseq
    %vm251 = vcmp.ge.s32.totalorder %v250, 0
    %vm252 = vcmp.lt.s32.totalorder %v250, 128
    %vm253 = vmand %vm251, %vm252
    %254 = vst.msk [vmem:[#allocation8] sm:$0x1] %vm253, %v235
    %255 = vst.msk [vmem:[#allocation8 + $0x1] sm:$0x1] %vm253, %v249
    // Predicated region
    $region26: #{tpu_custom_call.1} parent=1 // pred_check
      _
    $region27: #{tpu_custom_call.1} parent=1 // pred_check_branch
      %257 = sbr.rel (0) target = $region29
    $region28: #{tpu_custom_call.1} parent=1 // pred_region
      %259 = vsyncadd [#allocation4], 0
      %s261 = sshll.u32 [#allocation8], 4
      %s262 = int_to_ptr.vmem [resolvable:$true] %s261
      %s263 = sshll.u32 %s3, 4
      %s264 = int_to_ptr.hbm [resolvable:$true] %s263
      %266 = dma.vmem_to_hbm [thread:$0]  %s262, 32, %s264, [#allocation4]
    $region29: #{tpu_custom_call.1} parent=1 // pred_fallthru
      _
    // Predicated region
    $region30: #{tpu_custom_call.1} parent=1 // pred_check
      _
    $region31: #{tpu_custom_call.1} parent=1 // pred_check_branch
      %268 = sbr.rel (0) target = $region33
    $region32: #{tpu_custom_call.1} parent=1 // pred_region
      %270 = dma.done [#allocation4], 32
    $region33: #{tpu_custom_call.1} parent=1 // pred_fallthru
      _
    %271 = vsyncpa [#allocation3], 1
    %272 = vsyncpa [#allocation6], 1
    %273 = vsyncpa [#allocation4], 1

</llo_original>
